<compile_context>
chip_gen: v7x
topology: tpu7x:2x2x1
jax: 0.10.0
libtpu: 0.0.40
codegen_flags: <defaults>
</compile_context>

<pallas_src>
import math

import numpy as np
import jax
import jax.numpy as jnp
from jax.experimental import pallas as pl
from jax.experimental.pallas import tpu as pltpu

_LANE = 128


def _round_up(n, m):
    return ((n + m - 1) // m) * m


def mlp_encoder_kernel(x_ref, w1_ref, b1_ref, w2_ref, b2_ref, w3_ref, b3_ref,
                       out_ref):
    # One [TM, *] row tile: 3x (MXU matmul + f32 bias add + ReLU on the VPU).
    # x is cast to the weight dtype in VMEM (cheap VPU op, no extra HBM pass).
    x = x_ref[...].astype(w1_ref.dtype)

    h = jnp.dot(x, w1_ref[...], preferred_element_type=jnp.float32) + b1_ref[...]
    h = jnp.maximum(h, 0.0)

    h = jnp.dot(h.astype(w2_ref.dtype), w2_ref[...],
                preferred_element_type=jnp.float32) + b2_ref[...]
    h = jnp.maximum(h, 0.0)

    y = jnp.dot(h.astype(w3_ref.dtype), w3_ref[...],
                preferred_element_type=jnp.float32) + b3_ref[...]
    y = jnp.maximum(y, 0.0)

    out_ref[...] = y.astype(out_ref.dtype)


def pad_mlp_params(params, *, use_bf16=True):
    """Pad weights/biases once (output-feature axes -> lane-dense multiples of 128).

    Call once and pass the result to mlp_encoder(padded_params=..., dims=...) for
    repeated inference so the padding is not re-materialized per call.
    Zero padding is exact: padded weight rows/cols and bias lanes are zero and
    ReLU(0) = 0, so padded activation lanes stay zero through all three layers.
    """
    (w1, b1), (w2, b2), (w3, b3) = params
    F, H2 = w1.shape
    H = w2.shape[1]
    C = w3.shape[1]
    H2p, Hp, Cp = (_round_up(d, _LANE) for d in (H2, H, C))
    wdt = jnp.bfloat16 if use_bf16 else jnp.float32

    # w1 keeps its un-padded K axis (= F) so x can be streamed without padding.
    w1p = jnp.zeros((F, H2p), wdt).at[:, :H2].set(w1.astype(wdt))
    w2p = jnp.zeros((H2p, Hp), wdt).at[:H2, :H].set(w2.astype(wdt))
    w3p = jnp.zeros((Hp, Cp), wdt).at[:H, :C].set(w3.astype(wdt))
    # Biases and all post-matmul math stay f32 (v5e has no bf16 VPU/EUP).
    b1p = jnp.zeros((1, H2p), jnp.float32).at[0, :H2].set(b1.astype(jnp.float32))
    b2p = jnp.zeros((1, Hp), jnp.float32).at[0, :H].set(b2.astype(jnp.float32))
    b3p = jnp.zeros((1, Cp), jnp.float32).at[0, :C].set(b3.astype(jnp.float32))
    return (w1p, b1p, w2p, b2p, w3p, b3p), (F, H2, H, C)


def _vmem_capacity_bytes():
    try:
        return int(pltpu.get_tpu_info().vmem_capacity_bytes)
    except Exception:
        return 128 * 1024 * 1024  # v5e/v6e default


def mlp_encoder(x, params=None, *, padded_params=None, dims=None,
                use_bf16=True, out_dtype=jnp.float32, tm=1024,
                min_row_tiles=4, single_buffer_weights=True,
                vmem_limit_bytes=None):
    """relu(relu(relu(x@w1+b1)@w2+b2)@w3+b3); x: [N, nfeat] -> [N, ncla]."""
    if padded_params is None:
        if params is None:
            raise ValueError("pass either params or (padded_params, dims)")
        padded_params, dims = pad_mlp_params(params, use_bf16=use_bf16)
    if dims is None:
        raise ValueError("dims must be provided with padded_params")
    w1p, b1p, w2p, b2p, w3p, b3p = padded_params
    F, H2, H, C = dims
    H2p, Hp, Cp = w1p.shape[1], w2p.shape[1], w3p.shape[1]
    N = x.shape[0]
    assert x.shape[1] == F

    x_elem = x.dtype.itemsize
    w_elem = w1p.dtype.itemsize
    out_elem = np.dtype(out_dtype).itemsize

    # ---- generation-aware VMEM budget -> row tile TM -------------------------
    vmem_cap = _vmem_capacity_bytes()
    if vmem_limit_bytes is None:
        vmem_limit_bytes = int(vmem_cap * 0.85)
    budget = int(vmem_cap * 0.70)

    w_buf = 1 if single_buffer_weights else 2
    weight_bytes = w_buf * (
        (w1p.size + w2p.size + w3p.size) * w_elem
        + (b1p.size + b2p.size + b3p.size) * 4)
    # TODO(synk): K-tiled path for layer 1 when weight_bytes exceeds `budget`
    # (large nfeat); the VMEM-resident weight strategy assumes they fit.
    per_row_bytes = (2 * F * x_elem          # double-buffered x tile
                     + 2 * Cp * out_elem     # double-buffered out tile
                     + F * w_elem            # in-kernel cast copy of the x tile
                     + 4 * (H2p + Hp + Cp))  # live f32 activations
    tm_budget = max(8, (budget - weight_bytes) // per_row_bytes)

    # bf16 packs 2 rows per sublane -> prefer 16-row alignment in that case.
    pack = 16 if (w1p.dtype == jnp.bfloat16 or x.dtype == jnp.bfloat16) else 8
    TM = min(tm, tm_budget, _round_up(N, 8))
    # Keep at least a few row tiles when N allows: v7x megacore shards the
    # "parallel" axis across 2 TCs, and the pipeline needs tiles to overlap.
    if N >= min_row_tiles * pack:
        TM = min(TM, _round_up(pl.cdiv(N, min_row_tiles), pack))
    align = pack if TM >= pack else 8
    TM = max(8, (TM // align) * align)

    num_row_tiles = pl.cdiv(N, TM)
    Np = num_row_tiles * TM  # last x tile may read past N; those rows are
                             # independent garbage and get sliced off below.

    flops = 2 * N * (F * H2 + H2 * H + H * C)
    bytes_accessed = (N * F * x_elem
                      + (w1p.size + w2p.size + w3p.size) * w_elem
                      + (b1p.size + b2p.size + b3p.size) * 4
                      + Np * Cp * out_elem)

    def make_call(single_buffer):
        def const_spec(shape):
            # Constant block index -> weights stay VMEM-resident; single
            # buffering them avoids a pointless duplicate VMEM allocation.
            if single_buffer:
                return pl.BlockSpec(shape, lambda i: (0, 0),
                                    pipeline_mode=pl.Buffered(1))
            return pl.BlockSpec(shape, lambda i: (0, 0))

        return pl.pallas_call(
            mlp_encoder_kernel,
            out_shape=jax.ShapeDtypeStruct((Np, Cp), out_dtype),
            grid_spec=pltpu.PrefetchScalarGridSpec(
                num_scalar_prefetch=0,
                grid=(num_row_tiles,),
                in_specs=[
                    pl.BlockSpec((TM, F), lambda i: (i, 0)),  # x: streamed rows
                    const_spec((F, H2p)),                     # w1
                    const_spec((1, H2p)),                     # b1
                    const_spec((H2p, Hp)),                    # w2
                    const_spec((1, Hp)),                      # b2
                    const_spec((Hp, Cp)),                     # w3
                    const_spec((1, Cp)),                      # b3
                ],
                out_specs=pl.BlockSpec((TM, Cp), lambda i: (i, 0)),
            ),
            compiler_params=pltpu.CompilerParams(
                dimension_semantics=("parallel",),
                vmem_limit_bytes=vmem_limit_bytes,
            ),
            cost_estimate=pl.CostEstimate(
                flops=int(flops), transcendentals=0,
                bytes_accessed=int(bytes_accessed)),
        )

    args = (x, w1p, b1p, w2p, b2p, w3p, b3p)
    if single_buffer_weights:
        try:
            out_p = make_call(True)(*args)
        except Exception:
            # TODO(synk): pl.Buffered(1) not accepted by this JAX/Mosaic build;
            # fall back to default double-buffered resident weights.
            out_p = make_call(False)(*args)
    else:
        out_p = make_call(False)(*args)

    return out_p[:N, :C]


def _init_linear(key, in_features, out_features):
    """Mirror the PyTorch Linear shapes: weight [in, out], bias [out]."""
    kw, kb = jax.random.split(key)
    gain = math.sqrt(2.0 / (1.0 + 5.0))
    bound_w = gain * math.sqrt(3.0 / in_features)
    w = jax.random.uniform(kw, (in_features, out_features), jnp.float32,
                           minval=-bound_w, maxval=bound_w)
    stdv = 1.0 / math.sqrt(out_features)  # 1/sqrt(weight.size(1))
    b = jax.random.uniform(kb, (out_features,), jnp.float32,
                           minval=-stdv, maxval=stdv)
    return w, b


if __name__ == "__main__":
    key = jax.random.PRNGKey(0)
    kx, k1, k2, k3 = jax.random.split(key, 4)

    N, NFEAT, NHID, NCLA = 8, 32, 16, 8
    x = jax.random.normal(kx, (N, NFEAT), jnp.float32)
    params = (
        _init_linear(k1, NFEAT, NHID * 2),   # Linear1: nfeat -> 2*nhid
        _init_linear(k2, NHID * 2, NHID),    # Linear2: 2*nhid -> nhid
        _init_linear(k3, NHID, NCLA),        # Linear3: nhid -> ncla
    )

    # Pure-JAX reference (dropout identity in eval mode, use_bn=False).
    (w1, b1), (w2, b2), (w3, b3) = params
    h = jax.nn.relu(x @ w1 + b1)
    h = jax.nn.relu(h @ w2 + b2)
    ref = jax.nn.relu(h @ w3 + b3)

    # Strict f32 validation path.
    out_f32 = mlp_encoder(x, params, use_bf16=False)
    jax.block_until_ready(out_f32)
    assert out_f32.shape == (N, NCLA)
    assert jnp.allclose(out_f32, ref, atol=1e-5, rtol=1e-5)

    # Default path (bf16 weights, f32 accumulation) with pre-padded params
    # (weight padding hoisted out of the per-call path).
    padded, dims = pad_mlp_params(params, use_bf16=True)
    out_bf16 = mlp_encoder(x, padded_params=padded, dims=dims)
    jax.block_until_ready(out_bf16)
    assert out_bf16.shape == (N, NCLA)
    assert jnp.allclose(out_bf16, ref, atol=5e-2, rtol=5e-2)

    print("KERNEL_OK")
</pallas_src>

<mosaic_0001>
module attributes {stable_mosaic.version = 11 : i64} {
  func.func @mlp_encoder_kernel(%arg0: i32, %arg1: memref<8x32xf32, #tpu.memory_space<vmem>>, %arg2: memref<32x128xf32, #tpu.memory_space<vmem>>, %arg3: memref<1x128xf32, #tpu.memory_space<vmem>>, %arg4: memref<128x128xf32, #tpu.memory_space<vmem>>, %arg5: memref<1x128xf32, #tpu.memory_space<vmem>>, %arg6: memref<128x128xf32, #tpu.memory_space<vmem>>, %arg7: memref<1x128xf32, #tpu.memory_space<vmem>>, %arg8: memref<8x128xf32, #tpu.memory_space<vmem>>) attributes {dimension_semantics = [#tpu.dimension_semantics<parallel>], iteration_bounds = array<i64: 1>, scalar_prefetch = 0 : i64, scratch_operands = 0 : i64, tpu.core_type = #tpu.core_type<tc>, window_params = [{transform_indices = @transform_0, window_bounds = array<i64: 8, 32>}, {pipeline_mode = #tpu.pipeline_mode<synchronous>, transform_indices = @transform_1, window_bounds = array<i64: 32, 128>}, {pipeline_mode = #tpu.pipeline_mode<synchronous>, transform_indices = @transform_2, window_bounds = array<i64: 1, 128>}, {pipeline_mode = #tpu.pipeline_mode<synchronous>, transform_indices = @transform_3, window_bounds = array<i64: 128, 128>}, {pipeline_mode = #tpu.pipeline_mode<synchronous>, transform_indices = @transform_4, window_bounds = array<i64: 1, 128>}, {pipeline_mode = #tpu.pipeline_mode<synchronous>, transform_indices = @transform_5, window_bounds = array<i64: 128, 128>}, {pipeline_mode = #tpu.pipeline_mode<synchronous>, transform_indices = @transform_6, window_bounds = array<i64: 1, 128>}, {transform_indices = @transform_7, window_bounds = array<i64: 8, 128>}]} {
    %c0 = arith.constant 0 : index
    %c0_0 = arith.constant 0 : index
    %0 = vector.load %arg1[%c0, %c0_0] : memref<8x32xf32, #tpu.memory_space<vmem>>, vector<8x32xf32>
    %c0_1 = arith.constant 0 : index
    %c0_2 = arith.constant 0 : index
    %1 = vector.load %arg2[%c0_1, %c0_2] : memref<32x128xf32, #tpu.memory_space<vmem>>, vector<32x128xf32>
    %cst = arith.constant dense<0.000000e+00> : vector<8x128xf32>
    %2 = tpu.matmul %0, %1, %cst {dimension_numbers = #tpu.dot_dimension_numbers<[1], [0], [0], [1], [0, 0, 1, 1], [], []>} : vector<8x32xf32>, vector<32x128xf32>, vector<8x128xf32> -> vector<8x128xf32>
    %c0_3 = arith.constant 0 : index
    %c0_4 = arith.constant 0 : index
    %3 = vector.load %arg3[%c0_3, %c0_4] : memref<1x128xf32, #tpu.memory_space<vmem>>, vector<1x128xf32>
    %4 = vector.broadcast %3 : vector<1x128xf32> to vector<8x128xf32>
    %5 = arith.addf %2, %4 : vector<8x128xf32>
    %cst_5 = arith.constant 0.000000e+00 : f32
    %6 = vector.broadcast %cst_5 : f32 to vector<8x128xf32>
    %7 = arith.maximumf %5, %6 : vector<8x128xf32>
    %c0_6 = arith.constant 0 : index
    %c0_7 = arith.constant 0 : index
    %8 = vector.load %arg4[%c0_6, %c0_7] : memref<128x128xf32, #tpu.memory_space<vmem>>, vector<128x128xf32>
    %cst_8 = arith.constant dense<0.000000e+00> : vector<8x128xf32>
    %9 = tpu.matmul %7, %8, %cst_8 {dimension_numbers = #tpu.dot_dimension_numbers<[1], [0], [0], [1], [0, 0, 1, 1], [], []>} : vector<8x128xf32>, vector<128x128xf32>, vector<8x128xf32> -> vector<8x128xf32>
    %c0_9 = arith.constant 0 : index
    %c0_10 = arith.constant 0 : index
    %10 = vector.load %arg5[%c0_9, %c0_10] : memref<1x128xf32, #tpu.memory_space<vmem>>, vector<1x128xf32>
    %11 = vector.broadcast %10 : vector<1x128xf32> to vector<8x128xf32>
    %12 = arith.addf %9, %11 : vector<8x128xf32>
    %cst_11 = arith.constant 0.000000e+00 : f32
    %13 = vector.broadcast %cst_11 : f32 to vector<8x128xf32>
    %14 = arith.maximumf %12, %13 : vector<8x128xf32>
    %c0_12 = arith.constant 0 : index
    %c0_13 = arith.constant 0 : index
    %15 = vector.load %arg6[%c0_12, %c0_13] : memref<128x128xf32, #tpu.memory_space<vmem>>, vector<128x128xf32>
    %cst_14 = arith.constant dense<0.000000e+00> : vector<8x128xf32>
    %16 = tpu.matmul %14, %15, %cst_14 {dimension_numbers = #tpu.dot_dimension_numbers<[1], [0], [0], [1], [0, 0, 1, 1], [], []>} : vector<8x128xf32>, vector<128x128xf32>, vector<8x128xf32> -> vector<8x128xf32>
    %c0_15 = arith.constant 0 : index
    %c0_16 = arith.constant 0 : index
    %17 = vector.load %arg7[%c0_15, %c0_16] : memref<1x128xf32, #tpu.memory_space<vmem>>, vector<1x128xf32>
    %18 = vector.broadcast %17 : vector<1x128xf32> to vector<8x128xf32>
    %19 = arith.addf %16, %18 : vector<8x128xf32>
    %cst_17 = arith.constant 0.000000e+00 : f32
    %20 = vector.broadcast %cst_17 : f32 to vector<8x128xf32>
    %21 = arith.maximumf %19, %20 : vector<8x128xf32>
    %c0_18 = arith.constant 0 : index
    %c0_19 = arith.constant 0 : index
    %22 = vector.load %arg8[%c0_18, %c0_19] : memref<8x128xf32, #tpu.memory_space<vmem>>, vector<8x128xf32>
    tpu.vector_store %arg8[%c0_18, %c0_19], %21 {strides = array<i32>} : memref<8x128xf32, #tpu.memory_space<vmem>>, vector<8x128xf32>,
    return
  }
  func.func @transform_0(%arg0: i32) -> (i32, i32) {
    %c0_i32 = arith.constant 0 : i32
    %c0_i32_0 = arith.constant 0 : i32
    return %arg0, %c0_i32 : i32, i32
  }
  func.func @transform_1(%arg0: i32) -> (i32, i32) {
    %c0_i32 = arith.constant 0 : i32
    %c0_i32_0 = arith.constant 0 : i32
    %c0_i32_1 = arith.constant 0 : i32
    return %c0_i32, %c0_i32_0 : i32, i32
  }
  func.func @transform_2(%arg0: i32) -> (i32, i32) {
    %c0_i32 = arith.constant 0 : i32
    %c0_i32_0 = arith.constant 0 : i32
    %c0_i32_1 = arith.constant 0 : i32
    return %c0_i32, %c0_i32_0 : i32, i32
  }
  func.func @transform_3(%arg0: i32) -> (i32, i32) {
    %c0_i32 = arith.constant 0 : i32
    %c0_i32_0 = arith.constant 0 : i32
    %c0_i32_1 = arith.constant 0 : i32
    return %c0_i32, %c0_i32_0 : i32, i32
  }
  func.func @transform_4(%arg0: i32) -> (i32, i32) {
    %c0_i32 = arith.constant 0 : i32
    %c0_i32_0 = arith.constant 0 : i32
    %c0_i32_1 = arith.constant 0 : i32
    return %c0_i32, %c0_i32_0 : i32, i32
  }
  func.func @transform_5(%arg0: i32) -> (i32, i32) {
    %c0_i32 = arith.constant 0 : i32
    %c0_i32_0 = arith.constant 0 : i32
    %c0_i32_1 = arith.constant 0 : i32
    return %c0_i32, %c0_i32_0 : i32, i32
  }
  func.func @transform_6(%arg0: i32) -> (i32, i32) {
    %c0_i32 = arith.constant 0 : i32
    %c0_i32_0 = arith.constant 0 : i32
    %c0_i32_1 = arith.constant 0 : i32
    return %c0_i32, %c0_i32_0 : i32, i32
  }
  func.func @transform_7(%arg0: i32) -> (i32, i32) {
    %c0_i32 = arith.constant 0 : i32
    %c0_i32_0 = arith.constant 0 : i32
    return %arg0, %c0_i32 : i32, i32
  }
}

module attributes {stable_mosaic.version = 11 : i64} {
  func.func @mlp_encoder_kernel(%arg0: i32, %arg1: memref<8x32xf32, #tpu.memory_space<vmem>>, %arg2: memref<32x128xf32, #tpu.memory_space<vmem>>, %arg3: memref<1x128xf32, #tpu.memory_space<vmem>>, %arg4: memref<128x128xf32, #tpu.memory_space<vmem>>, %arg5: memref<1x128xf32, #tpu.memory_space<vmem>>, %arg6: memref<128x128xf32, #tpu.memory_space<vmem>>, %arg7: memref<1x128xf32, #tpu.memory_space<vmem>>, %arg8: memref<8x128xf32, #tpu.memory_space<vmem>>) attributes {dimension_semantics = [#tpu.dimension_semantics<parallel>], iteration_bounds = array<i64: 1>, scalar_prefetch = 0 : i64, scratch_operands = 0 : i64, tpu.core_type = #tpu.core_type<tc>, window_params = [{transform_indices = @transform_0, window_bounds = array<i64: 8, 32>}, {pipeline_mode = #tpu.pipeline_mode<synchronous>, transform_indices = @transform_1, window_bounds = array<i64: 32, 128>}, {pipeline_mode = #tpu.pipeline_mode<synchronous>, transform_indices = @transform_2, window_bounds = array<i64: 1, 128>}, {pipeline_mode = #tpu.pipeline_mode<synchronous>, transform_indices = @transform_3, window_bounds = array<i64: 128, 128>}, {pipeline_mode = #tpu.pipeline_mode<synchronous>, transform_indices = @transform_4, window_bounds = array<i64: 1, 128>}, {pipeline_mode = #tpu.pipeline_mode<synchronous>, transform_indices = @transform_5, window_bounds = array<i64: 128, 128>}, {pipeline_mode = #tpu.pipeline_mode<synchronous>, transform_indices = @transform_6, window_bounds = array<i64: 1, 128>}, {transform_indices = @transform_7, window_bounds = array<i64: 8, 128>}]} {
    %c0 = arith.constant 0 : index
    %c0_0 = arith.constant 0 : index
    %0 = vector.load %arg1[%c0, %c0_0] : memref<8x32xf32, #tpu.memory_space<vmem>>, vector<8x32xf32>
    %c0_1 = arith.constant 0 : index
    %c0_2 = arith.constant 0 : index
    %1 = vector.load %arg2[%c0_1, %c0_2] : memref<32x128xf32, #tpu.memory_space<vmem>>, vector<32x128xf32>
    %cst = arith.constant dense<0.000000e+00> : vector<8x128xf32>
    %2 = tpu.matmul %0, %1, %cst {dimension_numbers = #tpu.dot_dimension_numbers<[1], [0], [0], [1], [0, 0, 1, 1], [], []>} : vector<8x32xf32>, vector<32x128xf32>, vector<8x128xf32> -> vector<8x128xf32>
    %c0_3 = arith.constant 0 : index
    %c0_4 = arith.constant 0 : index
    %3 = vector.load %arg3[%c0_3, %c0_4] : memref<1x128xf32, #tpu.memory_space<vmem>>, vector<1x128xf32>
    %4 = vector.broadcast %3 : vector<1x128xf32> to vector<8x128xf32>
    %5 = arith.addf %2, %4 : vector<8x128xf32>
    %cst_5 = arith.constant 0.000000e+00 : f32
    %6 = vector.broadcast %cst_5 : f32 to vector<8x128xf32>
    %7 = arith.maximumf %5, %6 : vector<8x128xf32>
    %c0_6 = arith.constant 0 : index
    %c0_7 = arith.constant 0 : index
    %8 = vector.load %arg4[%c0_6, %c0_7] : memref<128x128xf32, #tpu.memory_space<vmem>>, vector<128x128xf32>
    %cst_8 = arith.constant dense<0.000000e+00> : vector<8x128xf32>
    %9 = tpu.matmul %7, %8, %cst_8 {dimension_numbers = #tpu.dot_dimension_numbers<[1], [0], [0], [1], [0, 0, 1, 1], [], []>} : vector<8x128xf32>, vector<128x128xf32>, vector<8x128xf32> -> vector<8x128xf32>
    %c0_9 = arith.constant 0 : index
    %c0_10 = arith.constant 0 : index
    %10 = vector.load %arg5[%c0_9, %c0_10] : memref<1x128xf32, #tpu.memory_space<vmem>>, vector<1x128xf32>
    %11 = vector.broadcast %10 : vector<1x128xf32> to vector<8x128xf32>
    %12 = arith.addf %9, %11 : vector<8x128xf32>
    %cst_11 = arith.constant 0.000000e+00 : f32
    %13 = vector.broadcast %cst_11 : f32 to vector<8x128xf32>
    %14 = arith.maximumf %12, %13 : vector<8x128xf32>
    %c0_12 = arith.constant 0 : index
    %c0_13 = arith.constant 0 : index
    %15 = vector.load %arg6[%c0_12, %c0_13] : memref<128x128xf32, #tpu.memory_space<vmem>>, vector<128x128xf32>
    %cst_14 = arith.constant dense<0.000000e+00> : vector<8x128xf32>
    %16 = tpu.matmul %14, %15, %cst_14 {dimension_numbers = #tpu.dot_dimension_numbers<[1], [0], [0], [1], [0, 0, 1, 1], [], []>} : vector<8x128xf32>, vector<128x128xf32>, vector<8x128xf32> -> vector<8x128xf32>
    %c0_15 = arith.constant 0 : index
    %c0_16 = arith.constant 0 : index
    %17 = vector.load %arg7[%c0_15, %c0_16] : memref<1x128xf32, #tpu.memory_space<vmem>>, vector<1x128xf32>
    %18 = vector.broadcast %17 : vector<1x128xf32> to vector<8x128xf32>
    %19 = arith.addf %16, %18 : vector<8x128xf32>
    %cst_17 = arith.constant 0.000000e+00 : f32
    %20 = vector.broadcast %cst_17 : f32 to vector<8x128xf32>
    %21 = arith.maximumf %19, %20 : vector<8x128xf32>
    %c0_18 = arith.constant 0 : index
    %c0_19 = arith.constant 0 : index
    %22 = vector.load %arg8[%c0_18, %c0_19] : memref<8x128xf32, #tpu.memory_space<vmem>>, vector<8x128xf32>
    tpu.vector_store %arg8[%c0_18, %c0_19], %21 {strides = array<i32>} : memref<8x128xf32, #tpu.memory_space<vmem>>, vector<8x128xf32>,
    return
  }
  func.func @transform_0(%arg0: i32) -> (i32, i32) {
    %c0_i32 = arith.constant 0 : i32
    %c0_i32_0 = arith.constant 0 : i32
    return %arg0, %c0_i32 : i32, i32
  }
  func.func @transform_1(%arg0: i32) -> (i32, i32) {
    %c0_i32 = arith.constant 0 : i32
    %c0_i32_0 = arith.constant 0 : i32
    %c0_i32_1 = arith.constant 0 : i32
    return %c0_i32, %c0_i32_0 : i32, i32
  }
  func.func @transform_2(%arg0: i32) -> (i32, i32) {
    %c0_i32 = arith.constant 0 : i32
    %c0_i32_0 = arith.constant 0 : i32
    %c0_i32_1 = arith.constant 0 : i32
    return %c0_i32, %c0_i32_0 : i32, i32
  }
  func.func @transform_3(%arg0: i32) -> (i32, i32) {
    %c0_i32 = arith.constant 0 : i32
    %c0_i32_0 = arith.constant 0 : i32
    %c0_i32_1 = arith.constant 0 : i32
    return %c0_i32, %c0_i32_0 : i32, i32
  }
  func.func @transform_4(%arg0: i32) -> (i32, i32) {
    %c0_i32 = arith.constant 0 : i32
    %c0_i32_0 = arith.constant 0 : i32
    %c0_i32_1 = arith.constant 0 : i32
    return %c0_i32, %c0_i32_0 : i32, i32
  }
  func.func @transform_5(%arg0: i32) -> (i32, i32) {
    %c0_i32 = arith.constant 0 : i32
    %c0_i32_0 = arith.constant 0 : i32
    %c0_i32_1 = arith.constant 0 : i32
    return %c0_i32, %c0_i32_0 : i32, i32
  }
  func.func @transform_6(%arg0: i32) -> (i32, i32) {
    %c0_i32 = arith.constant 0 : i32
    %c0_i32_0 = arith.constant 0 : i32
    %c0_i32_1 = arith.constant 0 : i32
    return %c0_i32, %c0_i32_0 : i32, i32
  }
  func.func @transform_7(%arg0: i32) -> (i32, i32) {
    %c0_i32 = arith.constant 0 : i32
    %c0_i32_0 = arith.constant 0 : i32
    return %arg0, %c0_i32 : i32, i32
  }
}

</mosaic_0001>

<llo_original>
// kernel: tpu_custom_call.1
$region0: #{tpu_custom_call.1}
  #allocation0 [shape = 'u32[]', space=smem, size = 0x4, offset = 0x4, fixed_abs, tag = 'smem constant byte address 0x4 - core index']
  #allocation1 [shape = 'u32[144,128]{1,0:T(1,128)}', space=vmem, size = 0x12000, scoped, tag = 'internal scratch']
  %s0 = inlined_call_operand.hbm [shape: f32[8,32], index: 0, kind: input, shape index: {}]
  %s1 = inlined_call_operand.hbm [shape: f32[32,128], index: 1, kind: input, shape index: {}]
  %s2 = inlined_call_operand.hbm [shape: f32[1,128], index: 2, kind: input, shape index: {}]
  %s3 = inlined_call_operand.hbm [shape: f32[128,128], index: 3, kind: input, shape index: {}]
  %s4 = inlined_call_operand.hbm [shape: f32[1,128], index: 4, kind: input, shape index: {}]
  %s5 = inlined_call_operand.hbm [shape: f32[128,128], index: 5, kind: input, shape index: {}]
  %s6 = inlined_call_operand.hbm [shape: f32[1,128], index: 6, kind: input, shape index: {}]
  %s7 = inlined_call_operand.hbm [shape: f32[8,128], index: 7, kind: output, shape index: {}]
  %s8 = sld [smem:[#allocation0]]
  $region66: #{tpu_custom_call.1} parent=0
    _
  %s10 = ssub.s32 1, %s8
  %s11 = scalar_select 0, %s10, %s8
  $region1: #{tpu_custom_call.1} parent=0
    #allocation2 [shape = 'u8[4096]{0}', space=vmem, size = 0x1000, scoped, tag = 'input window, operand 0, single buffered']
    #allocation3 [shape = 's32[1]{0}', space=sflag, size = 0x4, scoped, tag = 'scoped memory for tpu_custom_call.1']
    #allocation4 [shape = 's32[1]{0}', space=sflag, size = 0x4, scoped, tag = 'scoped memory for tpu_custom_call.1']
    #allocation5 [shape = 'u8[16384]{0}', space=vmem, size = 0x4000, scoped, tag = 'input window, operand 1, single buffered']
    #allocation6 [shape = 's32[1]{0}', space=sflag, size = 0x4, scoped, tag = 'scoped memory for tpu_custom_call.1']
    #allocation7 [shape = 'u8[512]{0}', space=vmem, size = 0x400, scoped, tag = 'input window, operand 2, single buffered']
    #allocation8 [shape = 'u8[65536]{0}', space=vmem, size = 0x10000, scoped, tag = 'input window, operand 3, single buffered']
    #allocation9 [shape = 's32[1]{0}', space=sflag, size = 0x4, scoped, tag = 'scoped memory for tpu_custom_call.1']
    #allocation10 [shape = 'u8[512]{0}', space=vmem, size = 0x400, scoped, tag = 'input window, operand 4, single buffered']
    #allocation11 [shape = 'u8[65536]{0}', space=vmem, size = 0x10000, scoped, tag = 'input window, operand 5, single buffered']
    #allocation12 [shape = 's32[1]{0}', space=sflag, size = 0x4, scoped, tag = 'scoped memory for tpu_custom_call.1']
    #allocation13 [shape = 'u8[512]{0}', space=vmem, size = 0x400, scoped, tag = 'input window, operand 6, single buffered']
    #allocation14 [shape = 'u8[4096]{0}', space=vmem, size = 0x1000, scoped, tag = 'output window, operand 0, single buffered']
    %12 = vsyncpa [#allocation3], 0
    %13 = vsyncpa [#allocation6], 0
    %14 = vsyncpa [#allocation9], 0
    %15 = vsyncpa [#allocation12], 0
    %16 = vsyncpa [#allocation4], 0
    // Predicated region
    $region2: #{tpu_custom_call.1} parent=1 // pred_check
      _
    $region3: #{tpu_custom_call.1} parent=1 // pred_check_branch
      %18 = sbr.rel (0) target = $region5
    $region4: #{tpu_custom_call.1} parent=1 // pred_region
      %s20 = ssub.s32 128, 128
      %21 = vsyncadd [#allocation3], %s20
      %s23 = sshll.u32 [#allocation2], 4
      %s24 = int_to_ptr.vmem [resolvable:$true] %s23
      %26 = dma.hbm_to_vmem [thread:$0]  %s0, 128, %s24, [#allocation3]
    $region5: #{tpu_custom_call.1} parent=1 // pred_fallthru
      _
    // Predicated region
    $region6: #{tpu_custom_call.1} parent=1 // pred_check
      _
    $region7: #{tpu_custom_call.1} parent=1 // pred_check_branch
      %28 = sbr.rel (0) target = $region9
    $region8: #{tpu_custom_call.1} parent=1 // pred_region
      %s30 = ssub.s32 512, 512
      %31 = vsyncadd [#allocation6], %s30
      %s32 = sshll.u32 [#allocation5], 4
      %s33 = int_to_ptr.vmem [resolvable:$true] %s32
      %38 = dma.hbm_to_vmem [thread:$0]  %s1, 512, %s33, [#allocation6], 128, 128, 8
    $region9: #{tpu_custom_call.1} parent=1 // pred_fallthru
      _
    // Predicated region
    $region10: #{tpu_custom_call.1} parent=1 // pred_check
      _
    $region11: #{tpu_custom_call.1} parent=1 // pred_check_branch
      %40 = sbr.rel (0) target = $region13
    $region12: #{tpu_custom_call.1} parent=1 // pred_region
      %s42 = ssub.s32 16, 16
      %43 = vsyncadd [#allocation6], %s42
      %s45 = sshll.u32 [#allocation7], 4
      %s46 = int_to_ptr.vmem [resolvable:$true] %s45
      %48 = dma.hbm_to_vmem [thread:$0]  %s2, 16, %s46, [#allocation6]
    $region13: #{tpu_custom_call.1} parent=1 // pred_fallthru
      _
    // Predicated region
    $region14: #{tpu_custom_call.1} parent=1 // pred_check
      _
    $region15: #{tpu_custom_call.1} parent=1 // pred_check_branch
      %50 = sbr.rel (0) target = $region17
    $region16: #{tpu_custom_call.1} parent=1 // pred_region
      %s52 = ssub.s32 2048, 2048
      %53 = vsyncadd [#allocation9], %s52
      %s54 = sshll.u32 [#allocation8], 4
      %s55 = int_to_ptr.vmem [resolvable:$true] %s54
      %60 = dma.hbm_to_vmem [thread:$0]  %s3, 2048, %s55, [#allocation9], 128, 128, 8
    $region17: #{tpu_custom_call.1} parent=1 // pred_fallthru
      _
    // Predicated region
    $region18: #{tpu_custom_call.1} parent=1 // pred_check
      _
    $region19: #{tpu_custom_call.1} parent=1 // pred_check_branch
      %62 = sbr.rel (0) target = $region21
    $region20: #{tpu_custom_call.1} parent=1 // pred_region
      %s64 = ssub.s32 16, 16
      %65 = vsyncadd [#allocation9], %s64
      %s67 = sshll.u32 [#allocation10], 4
      %s68 = int_to_ptr.vmem [resolvable:$true] %s67
      %70 = dma.hbm_to_vmem [thread:$0]  %s4, 16, %s68, [#allocation9]
    $region21: #{tpu_custom_call.1} parent=1 // pred_fallthru
      _
    // Predicated region
    $region22: #{tpu_custom_call.1} parent=1 // pred_check
      _
    $region23: #{tpu_custom_call.1} parent=1 // pred_check_branch
      %72 = sbr.rel (0) target = $region25
    $region24: #{tpu_custom_call.1} parent=1 // pred_region
      %s74 = ssub.s32 2048, 2048
      %75 = vsyncadd [#allocation12], %s74
      %s76 = sshll.u32 [#allocation11], 4
      %s77 = int_to_ptr.vmem [resolvable:$true] %s76
      %82 = dma.hbm_to_vmem [thread:$0]  %s5, 2048, %s77, [#allocation12], 128, 128, 8
    $region25: #{tpu_custom_call.1} parent=1 // pred_fallthru
      _
    // Predicated region
    $region26: #{tpu_custom_call.1} parent=1 // pred_check
      _
    $region27: #{tpu_custom_call.1} parent=1 // pred_check_branch
      %84 = sbr.rel (0) target = $region29
    $region28: #{tpu_custom_call.1} parent=1 // pred_region
      %s86 = ssub.s32 16, 16
      %87 = vsyncadd [#allocation12], %s86
      %s89 = sshll.u32 [#allocation13], 4
      %s90 = int_to_ptr.vmem [resolvable:$true] %s89
      %92 = dma.hbm_to_vmem [thread:$0]  %s6, 16, %s90, [#allocation12]
    $region29: #{tpu_custom_call.1} parent=1 // pred_fallthru
      _
    // Predicated region
    $region30: #{tpu_custom_call.1} parent=1 // pred_check
      _
    $region31: #{tpu_custom_call.1} parent=1 // pred_check_branch
      %94 = sbr.rel (0) target = $region33
    $region32: #{tpu_custom_call.1} parent=1 // pred_region
      %95 = dma.done [#allocation3], 128
    $region33: #{tpu_custom_call.1} parent=1 // pred_fallthru
      _
    // Predicated region
    $region34: #{tpu_custom_call.1} parent=1 // pred_check
      _
    $region35: #{tpu_custom_call.1} parent=1 // pred_check_branch
      %97 = sbr.rel (0) target = $region37
    $region36: #{tpu_custom_call.1} parent=1 // pred_region
      %98 = dma.done [#allocation6], 512
    $region37: #{tpu_custom_call.1} parent=1 // pred_fallthru
      _
    // Predicated region
    $region38: #{tpu_custom_call.1} parent=1 // pred_check
      _
    $region39: #{tpu_custom_call.1} parent=1 // pred_check_branch
      %100 = sbr.rel (0) target = $region41
    $region40: #{tpu_custom_call.1} parent=1 // pred_region
      %101 = dma.done [#allocation6], 16
    $region41: #{tpu_custom_call.1} parent=1 // pred_fallthru
      _
    // Predicated region
    $region42: #{tpu_custom_call.1} parent=1 // pred_check
      _
    $region43: #{tpu_custom_call.1} parent=1 // pred_check_branch
      %103 = sbr.rel (0) target = $region45
    $region44: #{tpu_custom_call.1} parent=1 // pred_region
      %104 = dma.done [#allocation9], 2048
    $region45: #{tpu_custom_call.1} parent=1 // pred_fallthru
      _
    // Predicated region
    $region46: #{tpu_custom_call.1} parent=1 // pred_check
      _
    $region47: #{tpu_custom_call.1} parent=1 // pred_check_branch
      %106 = sbr.rel (0) target = $region49
    $region48: #{tpu_custom_call.1} parent=1 // pred_region
      %107 = dma.done [#allocation9], 16
    $region49: #{tpu_custom_call.1} parent=1 // pred_fallthru
      _
    // Predicated region
    $region50: #{tpu_custom_call.1} parent=1 // pred_check
      _
    $region51: #{tpu_custom_call.1} parent=1 // pred_check_branch
      %109 = sbr.rel (0) target = $region53
    $region52: #{tpu_custom_call.1} parent=1 // pred_region
      %110 = dma.done [#allocation12], 2048
    $region53: #{tpu_custom_call.1} parent=1 // pred_fallthru
      _
    // Predicated region
    $region54: #{tpu_custom_call.1} parent=1 // pred_check
      _
    $region55: #{tpu_custom_call.1} parent=1 // pred_check_branch
      %112 = sbr.rel (0) target = $region57
    $region56: #{tpu_custom_call.1} parent=1 // pred_region
      %113 = dma.done [#allocation12], 16
    $region57: #{tpu_custom_call.1} parent=1 // pred_fallthru
      _
    %v114 = vld [vmem:[#allocation2] sm:$0xff]
    %v115 = vld [vmem:[#allocation5] sm:$0xff]
    %v116 = vld [vmem:[#allocation5 + $0x8] sm:$0xff]
    %v117 = vld [vmem:[#allocation5 + $0x10] sm:$0xff]
    %v118 = vld [vmem:[#allocation5 + $0x18] sm:$0xff]
    %v119 = vld [vmem:[#allocation7] sm:$0x1]
    %v121 = vlaneseq
    %v122 = vshrl.u32 %v121, 7
    %v123 = vsub.s32 0, %v122
    %v124 = vrot.slane %v119, %v123
    %vm126 = vcmask 261120
    %v128 = vsel %vm126, %v114, 0
    %130 = vmatprep.subr.mxu0 0.0
    %131 = vmatpush1.msra.mxu0 %v115
    %132 = vmatprep.subr.mxu0 0.0
    %133 = vmatpush1.msra.mxu0 %v116
    %134 = vmatprep.subr.mxu0 0.0
    %135 = vmatpush1.msra.mxu0 %v117
    %136 = vmatprep.subr.mxu0 0.0
    %137 = vmatpush1.msra.mxu0 %v118
    %138 = vmatprep.subr.mxu0 0.0
    %139 = vmatpush1.msra.mxu0 0.0
    %140 = vmatprep.subr.mxu0 0.0
    %141 = vmatpush1.msra.mxu0 0.0
    %142 = vmatprep.subr.mxu0 0.0
    %143 = vmatpush1.msra.mxu0 0.0
    %144 = vmatprep.subr.mxu0 0.0
    %145 = vmatpush1.msra.mxu0 0.0
    %146 = vmatprep.subr.mxu0 0.0
    %147 = vmatpush1.msra.mxu0 0.0
    %148 = vmatprep.subr.mxu0 0.0
    %149 = vmatpush1.msra.mxu0 0.0
    %150 = vmatprep.subr.mxu0 0.0
    %151 = vmatpush1.msra.mxu0 0.0
    %152 = vmatprep.subr.mxu0 0.0
    %153 = vmatpush1.msra.mxu0 0.0
    %154 = vmatprep.subr.mxu0 0.0
    %155 = vmatpush1.msra.mxu0 0.0
    %156 = vmatprep.subr.mxu0 0.0
    %157 = vmatpush1.msra.mxu0 0.0
    %158 = vmatprep.subr.mxu0 0.0
    %159 = vmatpush1.msra.mxu0 0.0
    %160 = vmatprep.subr.mxu0 0.0
    %161 = vmatpush1.msra.mxu0 0.0
    %162 = vmatprep.subr.mxu0 0.0
    %163 = vmatpush1.msra.mxu0 0.0
    %164 = vmatprep.subr.mxu0 0.0
    %165 = vmatpush1.msra.mxu0 0.0
    %166 = vmatprep.subr.mxu0 0.0
    %167 = vmatpush1.msra.mxu0 0.0
    %168 = vmatprep.subr.mxu0 0.0
    %169 = vmatpush1.msra.mxu0 0.0
    %170 = vmatprep.subr.mxu0 0.0
    %171 = vmatpush1.msra.mxu0 0.0
    %172 = vmatprep.subr.mxu0 0.0
    %173 = vmatpush1.msra.mxu0 0.0
    %174 = vmatprep.subr.mxu0 0.0
    %175 = vmatpush1.msra.mxu0 0.0
    %176 = vmatprep.subr.mxu0 0.0
    %177 = vmatpush1.msra.mxu0 0.0
    %178 = vmatprep.subr.mxu0 0.0
    %179 = vmatpush1.msra.mxu0 0.0
    %180 = vmatprep.subr.mxu0 0.0
    %181 = vmatpush1.msra.mxu0 0.0
    %182 = vmatprep.subr.mxu0 0.0
    %183 = vmatpush1.msra.mxu0 0.0
    %184 = vmatprep.subr.mxu0 0.0
    %185 = vmatpush1.msra.mxu0 0.0
    %186 = vmatprep.subr.mxu0 0.0
    %187 = vmatpush1.msra.mxu0 0.0
    %188 = vmatprep.subr.mxu0 0.0
    %189 = vmatpush1.msra.mxu0 0.0
    %190 = vmatprep.subr.mxu0 0.0
    %191 = vmatpush1.msra.mxu0 0.0
    %192 = vmatprep.subr.mxu0 0.0
    %193 = vmatpush1.msra.mxu0 0.0
    %194 = vmatprep.mubr.f32.mxu0 0.0
    %195 = vmatmul.mubr.f32.gmra.mrb[0].mxu0 %v128
    %v196 = vpop.f32.mrb[0].mxu0
    %v197 = vadd.f32 %v124, %v196
    %v198 = vpop.f32.mrb[0].mxu0
    %199 = vdwg.mxu0
    %v200 = vmax.f32 %v197, 0.0
    %v201 = vld [vmem:[#allocation8] sm:$0xff]
    %v202 = vld [vmem:[#allocation8 + $0x8] sm:$0xff]
    %v203 = vld [vmem:[#allocation8 + $0x10] sm:$0xff]
    %v204 = vld [vmem:[#allocation8 + $0x18] sm:$0xff]
    %v205 = vld [vmem:[#allocation8 + $0x20] sm:$0xff]
    %v206 = vld [vmem:[#allocation8 + $0x28] sm:$0xff]
    %v207 = vld [vmem:[#allocation8 + $0x30] sm:$0xff]
    %v208 = vld [vmem:[#allocation8 + $0x38] sm:$0xff]
    %v209 = vld [vmem:[#allocation8 + $0x40] sm:$0xff]
    %v210 = vld [vmem:[#allocation8 + $0x48] sm:$0xff]
    %v211 = vld [vmem:[#allocation8 + $0x50] sm:$0xff]
    %v212 = vld [vmem:[#allocation8 + $0x58] sm:$0xff]
    %v213 = vld [vmem:[#allocation8 + $0x60] sm:$0xff]
    %v214 = vld [vmem:[#allocation8 + $0x68] sm:$0xff]
    %v215 = vld [vmem:[#allocation8 + $0x70] sm:$0xff]
    %v216 = vld [vmem:[#allocation8 + $0x78] sm:$0xff]
    %v217 = vld [vmem:[#allocation10] sm:$0x1]
    %v219 = vlaneseq
    %v220 = vshrl.u32 %v219, 7
    %v221 = vsub.s32 0, %v220
    %v222 = vrot.slane %v217, %v221
    %224 = vmatprep.subr.mxu0 0.0
    %225 = vmatpush1.msra.mxu0 %v201
    %226 = vmatprep.subr.mxu0 0.0
    %227 = vmatpush1.msra.mxu0 %v202
    %228 = vmatprep.subr.mxu0 0.0
    %229 = vmatpush1.msra.mxu0 %v203
    %230 = vmatprep.subr.mxu0 0.0
    %231 = vmatpush1.msra.mxu0 %v204
    %232 = vmatprep.subr.mxu0 0.0
    %233 = vmatpush1.msra.mxu0 %v205
    %234 = vmatprep.subr.mxu0 0.0
    %235 = vmatpush1.msra.mxu0 %v206
    %236 = vmatprep.subr.mxu0 0.0
    %237 = vmatpush1.msra.mxu0 %v207
    %238 = vmatprep.subr.mxu0 0.0
    %239 = vmatpush1.msra.mxu0 %v208
    %240 = vmatprep.subr.mxu0 0.0
    %241 = vmatpush1.msra.mxu0 %v209
    %242 = vmatprep.subr.mxu0 0.0
    %243 = vmatpush1.msra.mxu0 %v210
    %244 = vmatprep.subr.mxu0 0.0
    %245 = vmatpush1.msra.mxu0 %v211
    %246 = vmatprep.subr.mxu0 0.0
    %247 = vmatpush1.msra.mxu0 %v212
    %248 = vmatprep.subr.mxu0 0.0
    %249 = vmatpush1.msra.mxu0 %v213
    %250 = vmatprep.subr.mxu0 0.0
    %251 = vmatpush1.msra.mxu0 %v214
    %252 = vmatprep.subr.mxu0 0.0
    %253 = vmatpush1.msra.mxu0 %v215
    %254 = vmatprep.subr.mxu0 0.0
    %255 = vmatpush1.msra.mxu0 %v216
    %256 = vmatprep.subr.mxu0 0.0
    %257 = vmatpush1.msra.mxu0 0.0
    %258 = vmatprep.subr.mxu0 0.0
    %259 = vmatpush1.msra.mxu0 0.0
    %260 = vmatprep.subr.mxu0 0.0
    %261 = vmatpush1.msra.mxu0 0.0
    %262 = vmatprep.subr.mxu0 0.0
    %263 = vmatpush1.msra.mxu0 0.0
    %264 = vmatprep.subr.mxu0 0.0
    %265 = vmatpush1.msra.mxu0 0.0
    %266 = vmatprep.subr.mxu0 0.0
    %267 = vmatpush1.msra.mxu0 0.0
    %268 = vmatprep.subr.mxu0 0.0
    %269 = vmatpush1.msra.mxu0 0.0
    %270 = vmatprep.subr.mxu0 0.0
    %271 = vmatpush1.msra.mxu0 0.0
    %272 = vmatprep.subr.mxu0 0.0
    %273 = vmatpush1.msra.mxu0 0.0
    %274 = vmatprep.subr.mxu0 0.0
    %275 = vmatpush1.msra.mxu0 0.0
    %276 = vmatprep.subr.mxu0 0.0
    %277 = vmatpush1.msra.mxu0 0.0
    %278 = vmatprep.subr.mxu0 0.0
    %279 = vmatpush1.msra.mxu0 0.0
    %280 = vmatprep.subr.mxu0 0.0
    %281 = vmatpush1.msra.mxu0 0.0
    %282 = vmatprep.subr.mxu0 0.0
    %283 = vmatpush1.msra.mxu0 0.0
    %284 = vmatprep.subr.mxu0 0.0
    %285 = vmatpush1.msra.mxu0 0.0
    %286 = vmatprep.subr.mxu0 0.0
    %287 = vmatpush1.msra.mxu0 0.0
    %288 = vmatprep.mubr.f32.mxu0 0.0
    %289 = vmatmul.mubr.f32.gmra.mrb[0].mxu0 %v200
    %v290 = vpop.f32.mrb[0].mxu0
    %v291 = vadd.f32 %v222, %v290
    %v292 = vpop.f32.mrb[0].mxu0
    %293 = vdwg.mxu0
    %v294 = vmax.f32 %v291, 0.0
    %v295 = vld [vmem:[#allocation11] sm:$0xff]
    %v296 = vld [vmem:[#allocation11 + $0x8] sm:$0xff]
    %v297 = vld [vmem:[#allocation11 + $0x10] sm:$0xff]
    %v298 = vld [vmem:[#allocation11 + $0x18] sm:$0xff]
    %v299 = vld [vmem:[#allocation11 + $0x20] sm:$0xff]
    %v300 = vld [vmem:[#allocation11 + $0x28] sm:$0xff]
    %v301 = vld [vmem:[#allocation11 + $0x30] sm:$0xff]
    %v302 = vld [vmem:[#allocation11 + $0x38] sm:$0xff]
    %v303 = vld [vmem:[#allocation11 + $0x40] sm:$0xff]
    %v304 = vld [vmem:[#allocation11 + $0x48] sm:$0xff]
    %v305 = vld [vmem:[#allocation11 + $0x50] sm:$0xff]
    %v306 = vld [vmem:[#allocation11 + $0x58] sm:$0xff]
    %v307 = vld [vmem:[#allocation11 + $0x60] sm:$0xff]
    %v308 = vld [vmem:[#allocation11 + $0x68] sm:$0xff]
    %v309 = vld [vmem:[#allocation11 + $0x70] sm:$0xff]
    %v310 = vld [vmem:[#allocation11 + $0x78] sm:$0xff]
    %v311 = vld [vmem:[#allocation13] sm:$0x1]
    %v313 = vlaneseq
    %v314 = vshrl.u32 %v313, 7
    %v315 = vsub.s32 0, %v314
    %v316 = vrot.slane %v311, %v315
    %318 = vmatprep.subr.mxu0 0.0
    %319 = vmatpush1.msra.mxu0 %v295
    %320 = vmatprep.subr.mxu0 0.0
    %321 = vmatpush1.msra.mxu0 %v296
    %322 = vmatprep.subr.mxu0 0.0
    %323 = vmatpush1.msra.mxu0 %v297
    %324 = vmatprep.subr.mxu0 0.0
    %325 = vmatpush1.msra.mxu0 %v298
    %326 = vmatprep.subr.mxu0 0.0
    %327 = vmatpush1.msra.mxu0 %v299
    %328 = vmatprep.subr.mxu0 0.0
    %329 = vmatpush1.msra.mxu0 %v300
    %330 = vmatprep.subr.mxu0 0.0
    %331 = vmatpush1.msra.mxu0 %v301
    %332 = vmatprep.subr.mxu0 0.0
    %333 = vmatpush1.msra.mxu0 %v302
    %334 = vmatprep.subr.mxu0 0.0
    %335 = vmatpush1.msra.mxu0 %v303
    %336 = vmatprep.subr.mxu0 0.0
    %337 = vmatpush1.msra.mxu0 %v304
    %338 = vmatprep.subr.mxu0 0.0
    %339 = vmatpush1.msra.mxu0 %v305
    %340 = vmatprep.subr.mxu0 0.0
    %341 = vmatpush1.msra.mxu0 %v306
    %342 = vmatprep.subr.mxu0 0.0
    %343 = vmatpush1.msra.mxu0 %v307
    %344 = vmatprep.subr.mxu0 0.0
    %345 = vmatpush1.msra.mxu0 %v308
    %346 = vmatprep.subr.mxu0 0.0
    %347 = vmatpush1.msra.mxu0 %v309
    %348 = vmatprep.subr.mxu0 0.0
    %349 = vmatpush1.msra.mxu0 %v310
    %350 = vmatprep.subr.mxu0 0.0
    %351 = vmatpush1.msra.mxu0 0.0
    %352 = vmatprep.subr.mxu0 0.0
    %353 = vmatpush1.msra.mxu0 0.0
    %354 = vmatprep.subr.mxu0 0.0
    %355 = vmatpush1.msra.mxu0 0.0
    %356 = vmatprep.subr.mxu0 0.0
    %357 = vmatpush1.msra.mxu0 0.0
    %358 = vmatprep.subr.mxu0 0.0
    %359 = vmatpush1.msra.mxu0 0.0
    %360 = vmatprep.subr.mxu0 0.0
    %361 = vmatpush1.msra.mxu0 0.0
    %362 = vmatprep.subr.mxu0 0.0
    %363 = vmatpush1.msra.mxu0 0.0
    %364 = vmatprep.subr.mxu0 0.0
    %365 = vmatpush1.msra.mxu0 0.0
    %366 = vmatprep.subr.mxu0 0.0
    %367 = vmatpush1.msra.mxu0 0.0
    %368 = vmatprep.subr.mxu0 0.0
    %369 = vmatpush1.msra.mxu0 0.0
    %370 = vmatprep.subr.mxu0 0.0
    %371 = vmatpush1.msra.mxu0 0.0
    %372 = vmatprep.subr.mxu0 0.0
    %373 = vmatpush1.msra.mxu0 0.0
    %374 = vmatprep.subr.mxu0 0.0
    %375 = vmatpush1.msra.mxu0 0.0
    %376 = vmatprep.subr.mxu0 0.0
    %377 = vmatpush1.msra.mxu0 0.0
    %378 = vmatprep.subr.mxu0 0.0
    %379 = vmatpush1.msra.mxu0 0.0
    %380 = vmatprep.subr.mxu0 0.0
    %381 = vmatpush1.msra.mxu0 0.0
    %382 = vmatprep.mubr.f32.mxu0 0.0
    %383 = vmatmul.mubr.f32.gmra.mrb[0].mxu0 %v294
    %v384 = vpop.f32.mrb[0].mxu0
    %v385 = vadd.f32 %v316, %v384
    %v386 = vpop.f32.mrb[0].mxu0
    %387 = vdwg.mxu0
    %v388 = vmax.f32 %v385, 0.0
    %389 = vst [vmem:[#allocation14] sm:$0xff] %v388
    // Predicated region
    $region58: #{tpu_custom_call.1} parent=1 // pred_check
      _
    $region59: #{tpu_custom_call.1} parent=1 // pred_check_branch
      %391 = sbr.rel (0) target = $region61
    $region60: #{tpu_custom_call.1} parent=1 // pred_region
      %s393 = ssub.s32 128, 128
      %394 = vsyncadd [#allocation4], %s393
      %s396 = sshll.u32 [#allocation14], 4
      %s397 = int_to_ptr.vmem [resolvable:$true] %s396
      %399 = dma.vmem_to_hbm [thread:$0]  %s397, 128, %s7, [#allocation4]
    $region61: #{tpu_custom_call.1} parent=1 // pred_fallthru
      _
    // Predicated region
    $region62: #{tpu_custom_call.1} parent=1 // pred_check
      _
    $region63: #{tpu_custom_call.1} parent=1 // pred_check_branch
      %401 = sbr.rel (0) target = $region65
    $region64: #{tpu_custom_call.1} parent=1 // pred_region
      %402 = dma.done [#allocation4], 128
    $region65: #{tpu_custom_call.1} parent=1 // pred_fallthru
      _
    %403 = vsyncpa [#allocation3], 1
    %404 = vsyncpa [#allocation6], 1
    %405 = vsyncpa [#allocation9], 1
    %406 = vsyncpa [#allocation12], 1
    %407 = vsyncpa [#allocation4], 1

// kernel: tpu_custom_call.1
$region0: #{tpu_custom_call.1}
  #allocation0 [shape = 'u32[]', space=smem, size = 0x4, offset = 0x4, fixed_abs, tag = 'smem constant byte address 0x4 - core index']
  #allocation1 [shape = 'u32[144,128]{1,0:T(1,128)}', space=vmem, size = 0x12000, scoped, tag = 'internal scratch']
  %s0 = inlined_call_operand.hbm [shape: f32[8,32], index: 0, kind: input, shape index: {}]
  %s1 = inlined_call_operand.hbm [shape: f32[32,128], index: 1, kind: input, shape index: {}]
  %s2 = inlined_call_operand.hbm [shape: f32[1,128], index: 2, kind: input, shape index: {}]
  %s3 = inlined_call_operand.hbm [shape: f32[128,128], index: 3, kind: input, shape index: {}]
  %s4 = inlined_call_operand.hbm [shape: f32[1,128], index: 4, kind: input, shape index: {}]
  %s5 = inlined_call_operand.hbm [shape: f32[128,128], index: 5, kind: input, shape index: {}]
  %s6 = inlined_call_operand.hbm [shape: f32[1,128], index: 6, kind: input, shape index: {}]
  %s7 = inlined_call_operand.hbm [shape: f32[8,128], index: 7, kind: output, shape index: {}]
  %s8 = sld [smem:[#allocation0]]
  $region66: #{tpu_custom_call.1} parent=0
    _
  %s10 = ssub.s32 1, %s8
  %s11 = scalar_select 0, %s10, %s8
  $region1: #{tpu_custom_call.1} parent=0
    #allocation2 [shape = 'u8[4096]{0}', space=vmem, size = 0x1000, scoped, tag = 'input window, operand 0, single buffered']
    #allocation3 [shape = 's32[1]{0}', space=sflag, size = 0x4, scoped, tag = 'scoped memory for tpu_custom_call.1']
    #allocation4 [shape = 's32[1]{0}', space=sflag, size = 0x4, scoped, tag = 'scoped memory for tpu_custom_call.1']
    #allocation5 [shape = 'u8[16384]{0}', space=vmem, size = 0x4000, scoped, tag = 'input window, operand 1, single buffered']
    #allocation6 [shape = 's32[1]{0}', space=sflag, size = 0x4, scoped, tag = 'scoped memory for tpu_custom_call.1']
    #allocation7 [shape = 'u8[512]{0}', space=vmem, size = 0x400, scoped, tag = 'input window, operand 2, single buffered']
    #allocation8 [shape = 'u8[65536]{0}', space=vmem, size = 0x10000, scoped, tag = 'input window, operand 3, single buffered']
    #allocation9 [shape = 's32[1]{0}', space=sflag, size = 0x4, scoped, tag = 'scoped memory for tpu_custom_call.1']
    #allocation10 [shape = 'u8[512]{0}', space=vmem, size = 0x400, scoped, tag = 'input window, operand 4, single buffered']
    #allocation11 [shape = 'u8[65536]{0}', space=vmem, size = 0x10000, scoped, tag = 'input window, operand 5, single buffered']
    #allocation12 [shape = 's32[1]{0}', space=sflag, size = 0x4, scoped, tag = 'scoped memory for tpu_custom_call.1']
    #allocation13 [shape = 'u8[512]{0}', space=vmem, size = 0x400, scoped, tag = 'input window, operand 6, single buffered']
    #allocation14 [shape = 'u8[4096]{0}', space=vmem, size = 0x1000, scoped, tag = 'output window, operand 0, single buffered']
    %12 = vsyncpa [#allocation3], 0
    %13 = vsyncpa [#allocation6], 0
    %14 = vsyncpa [#allocation9], 0
    %15 = vsyncpa [#allocation12], 0
    %16 = vsyncpa [#allocation4], 0
    // Predicated region
    $region2: #{tpu_custom_call.1} parent=1 // pred_check
      _
    $region3: #{tpu_custom_call.1} parent=1 // pred_check_branch
      %18 = sbr.rel (0) target = $region5
    $region4: #{tpu_custom_call.1} parent=1 // pred_region
      %s20 = ssub.s32 128, 128
      %21 = vsyncadd [#allocation3], %s20
      %s23 = sshll.u32 [#allocation2], 4
      %s24 = int_to_ptr.vmem [resolvable:$true] %s23
      %26 = dma.hbm_to_vmem [thread:$0]  %s0, 128, %s24, [#allocation3]
    $region5: #{tpu_custom_call.1} parent=1 // pred_fallthru
      _
    // Predicated region
    $region6: #{tpu_custom_call.1} parent=1 // pred_check
      _
    $region7: #{tpu_custom_call.1} parent=1 // pred_check_branch
      %28 = sbr.rel (0) target = $region9
    $region8: #{tpu_custom_call.1} parent=1 // pred_region
      %s30 = ssub.s32 512, 512
      %31 = vsyncadd [#allocation6], %s30
      %s32 = sshll.u32 [#allocation5], 4
      %s33 = int_to_ptr.vmem [resolvable:$true] %s32
      %38 = dma.hbm_to_vmem [thread:$0]  %s1, 512, %s33, [#allocation6], 128, 128, 8
    $region9: #{tpu_custom_call.1} parent=1 // pred_fallthru
      _
    // Predicated region
    $region10: #{tpu_custom_call.1} parent=1 // pred_check
      _
    $region11: #{tpu_custom_call.1} parent=1 // pred_check_branch
      %40 = sbr.rel (0) target = $region13
    $region12: #{tpu_custom_call.1} parent=1 // pred_region
      %s42 = ssub.s32 16, 16
      %43 = vsyncadd [#allocation6], %s42
      %s45 = sshll.u32 [#allocation7], 4
      %s46 = int_to_ptr.vmem [resolvable:$true] %s45
      %48 = dma.hbm_to_vmem [thread:$0]  %s2, 16, %s46, [#allocation6]
    $region13: #{tpu_custom_call.1} parent=1 // pred_fallthru
      _
    // Predicated region
    $region14: #{tpu_custom_call.1} parent=1 // pred_check
      _
    $region15: #{tpu_custom_call.1} parent=1 // pred_check_branch
      %50 = sbr.rel (0) target = $region17
    $region16: #{tpu_custom_call.1} parent=1 // pred_region
      %s52 = ssub.s32 2048, 2048
      %53 = vsyncadd [#allocation9], %s52
      %s54 = sshll.u32 [#allocation8], 4
      %s55 = int_to_ptr.vmem [resolvable:$true] %s54
      %60 = dma.hbm_to_vmem [thread:$0]  %s3, 2048, %s55, [#allocation9], 128, 128, 8
    $region17: #{tpu_custom_call.1} parent=1 // pred_fallthru
      _
    // Predicated region
    $region18: #{tpu_custom_call.1} parent=1 // pred_check
      _
    $region19: #{tpu_custom_call.1} parent=1 // pred_check_branch
      %62 = sbr.rel (0) target = $region21
    $region20: #{tpu_custom_call.1} parent=1 // pred_region
      %s64 = ssub.s32 16, 16
      %65 = vsyncadd [#allocation9], %s64
      %s67 = sshll.u32 [#allocation10], 4
      %s68 = int_to_ptr.vmem [resolvable:$true] %s67
      %70 = dma.hbm_to_vmem [thread:$0]  %s4, 16, %s68, [#allocation9]
    $region21: #{tpu_custom_call.1} parent=1 // pred_fallthru
      _
    // Predicated region
    $region22: #{tpu_custom_call.1} parent=1 // pred_check
      _
    $region23: #{tpu_custom_call.1} parent=1 // pred_check_branch
      %72 = sbr.rel (0) target = $region25
    $region24: #{tpu_custom_call.1} parent=1 // pred_region
      %s74 = ssub.s32 2048, 2048
      %75 = vsyncadd [#allocation12], %s74
      %s76 = sshll.u32 [#allocation11], 4
      %s77 = int_to_ptr.vmem [resolvable:$true] %s76
      %82 = dma.hbm_to_vmem [thread:$0]  %s5, 2048, %s77, [#allocation12], 128, 128, 8
    $region25: #{tpu_custom_call.1} parent=1 // pred_fallthru
      _
    // Predicated region
    $region26: #{tpu_custom_call.1} parent=1 // pred_check
      _
    $region27: #{tpu_custom_call.1} parent=1 // pred_check_branch
      %84 = sbr.rel (0) target = $region29
    $region28: #{tpu_custom_call.1} parent=1 // pred_region
      %s86 = ssub.s32 16, 16
      %87 = vsyncadd [#allocation12], %s86
      %s89 = sshll.u32 [#allocation13], 4
      %s90 = int_to_ptr.vmem [resolvable:$true] %s89
      %92 = dma.hbm_to_vmem [thread:$0]  %s6, 16, %s90, [#allocation12]
    $region29: #{tpu_custom_call.1} parent=1 // pred_fallthru
      _
    // Predicated region
    $region30: #{tpu_custom_call.1} parent=1 // pred_check
      _
    $region31: #{tpu_custom_call.1} parent=1 // pred_check_branch
      %94 = sbr.rel (0) target = $region33
    $region32: #{tpu_custom_call.1} parent=1 // pred_region
      %95 = dma.done [#allocation3], 128
    $region33: #{tpu_custom_call.1} parent=1 // pred_fallthru
      _
    // Predicated region
    $region34: #{tpu_custom_call.1} parent=1 // pred_check
      _
    $region35: #{tpu_custom_call.1} parent=1 // pred_check_branch
      %97 = sbr.rel (0) target = $region37
    $region36: #{tpu_custom_call.1} parent=1 // pred_region
      %98 = dma.done [#allocation6], 512
    $region37: #{tpu_custom_call.1} parent=1 // pred_fallthru
      _
    // Predicated region
    $region38: #{tpu_custom_call.1} parent=1 // pred_check
      _
    $region39: #{tpu_custom_call.1} parent=1 // pred_check_branch
      %100 = sbr.rel (0) target = $region41
    $region40: #{tpu_custom_call.1} parent=1 // pred_region
      %101 = dma.done [#allocation6], 16
    $region41: #{tpu_custom_call.1} parent=1 // pred_fallthru
      _
    // Predicated region
    $region42: #{tpu_custom_call.1} parent=1 // pred_check
      _
    $region43: #{tpu_custom_call.1} parent=1 // pred_check_branch
      %103 = sbr.rel (0) target = $region45
    $region44: #{tpu_custom_call.1} parent=1 // pred_region
      %104 = dma.done [#allocation9], 2048
    $region45: #{tpu_custom_call.1} parent=1 // pred_fallthru
      _
    // Predicated region
    $region46: #{tpu_custom_call.1} parent=1 // pred_check
      _
    $region47: #{tpu_custom_call.1} parent=1 // pred_check_branch
      %106 = sbr.rel (0) target = $region49
    $region48: #{tpu_custom_call.1} parent=1 // pred_region
      %107 = dma.done [#allocation9], 16
    $region49: #{tpu_custom_call.1} parent=1 // pred_fallthru
      _
    // Predicated region
    $region50: #{tpu_custom_call.1} parent=1 // pred_check
      _
    $region51: #{tpu_custom_call.1} parent=1 // pred_check_branch
      %109 = sbr.rel (0) target = $region53
    $region52: #{tpu_custom_call.1} parent=1 // pred_region
      %110 = dma.done [#allocation12], 2048
    $region53: #{tpu_custom_call.1} parent=1 // pred_fallthru
      _
    // Predicated region
    $region54: #{tpu_custom_call.1} parent=1 // pred_check
      _
    $region55: #{tpu_custom_call.1} parent=1 // pred_check_branch
      %112 = sbr.rel (0) target = $region57
    $region56: #{tpu_custom_call.1} parent=1 // pred_region
      %113 = dma.done [#allocation12], 16
    $region57: #{tpu_custom_call.1} parent=1 // pred_fallthru
      _
    %v114 = vld [vmem:[#allocation2] sm:$0xff]
    %v115 = vld [vmem:[#allocation5] sm:$0xff]
    %v116 = vld [vmem:[#allocation5 + $0x8] sm:$0xff]
    %v117 = vld [vmem:[#allocation5 + $0x10] sm:$0xff]
    %v118 = vld [vmem:[#allocation5 + $0x18] sm:$0xff]
    %v119 = vld [vmem:[#allocation7] sm:$0x1]
    %v121 = vlaneseq
    %v122 = vshrl.u32 %v121, 7
    %v123 = vsub.s32 0, %v122
    %v124 = vrot.slane %v119, %v123
    %vm126 = vcmask 261120
    %v128 = vsel %vm126, %v114, 0
    %130 = vmatprep.subr.mxu0 0.0
    %131 = vmatpush1.msra.mxu0 %v115
    %132 = vmatprep.subr.mxu0 0.0
    %133 = vmatpush1.msra.mxu0 %v116
    %134 = vmatprep.subr.mxu0 0.0
    %135 = vmatpush1.msra.mxu0 %v117
    %136 = vmatprep.subr.mxu0 0.0
    %137 = vmatpush1.msra.mxu0 %v118
    %138 = vmatprep.subr.mxu0 0.0
    %139 = vmatpush1.msra.mxu0 0.0
    %140 = vmatprep.subr.mxu0 0.0
    %141 = vmatpush1.msra.mxu0 0.0
    %142 = vmatprep.subr.mxu0 0.0
    %143 = vmatpush1.msra.mxu0 0.0
    %144 = vmatprep.subr.mxu0 0.0
    %145 = vmatpush1.msra.mxu0 0.0
    %146 = vmatprep.subr.mxu0 0.0
    %147 = vmatpush1.msra.mxu0 0.0
    %148 = vmatprep.subr.mxu0 0.0
    %149 = vmatpush1.msra.mxu0 0.0
    %150 = vmatprep.subr.mxu0 0.0
    %151 = vmatpush1.msra.mxu0 0.0
    %152 = vmatprep.subr.mxu0 0.0
    %153 = vmatpush1.msra.mxu0 0.0
    %154 = vmatprep.subr.mxu0 0.0
    %155 = vmatpush1.msra.mxu0 0.0
    %156 = vmatprep.subr.mxu0 0.0
    %157 = vmatpush1.msra.mxu0 0.0
    %158 = vmatprep.subr.mxu0 0.0
    %159 = vmatpush1.msra.mxu0 0.0
    %160 = vmatprep.subr.mxu0 0.0
    %161 = vmatpush1.msra.mxu0 0.0
    %162 = vmatprep.subr.mxu0 0.0
    %163 = vmatpush1.msra.mxu0 0.0
    %164 = vmatprep.subr.mxu0 0.0
    %165 = vmatpush1.msra.mxu0 0.0
    %166 = vmatprep.subr.mxu0 0.0
    %167 = vmatpush1.msra.mxu0 0.0
    %168 = vmatprep.subr.mxu0 0.0
    %169 = vmatpush1.msra.mxu0 0.0
    %170 = vmatprep.subr.mxu0 0.0
    %171 = vmatpush1.msra.mxu0 0.0
    %172 = vmatprep.subr.mxu0 0.0
    %173 = vmatpush1.msra.mxu0 0.0
    %174 = vmatprep.subr.mxu0 0.0
    %175 = vmatpush1.msra.mxu0 0.0
    %176 = vmatprep.subr.mxu0 0.0
    %177 = vmatpush1.msra.mxu0 0.0
    %178 = vmatprep.subr.mxu0 0.0
    %179 = vmatpush1.msra.mxu0 0.0
    %180 = vmatprep.subr.mxu0 0.0
    %181 = vmatpush1.msra.mxu0 0.0
    %182 = vmatprep.subr.mxu0 0.0
    %183 = vmatpush1.msra.mxu0 0.0
    %184 = vmatprep.subr.mxu0 0.0
    %185 = vmatpush1.msra.mxu0 0.0
    %186 = vmatprep.subr.mxu0 0.0
    %187 = vmatpush1.msra.mxu0 0.0
    %188 = vmatprep.subr.mxu0 0.0
    %189 = vmatpush1.msra.mxu0 0.0
    %190 = vmatprep.subr.mxu0 0.0
    %191 = vmatpush1.msra.mxu0 0.0
    %192 = vmatprep.subr.mxu0 0.0
    %193 = vmatpush1.msra.mxu0 0.0
    %194 = vmatprep.mubr.f32.mxu0 0.0
    %195 = vmatmul.mubr.f32.gmra.mrb[0].mxu0 %v128
    %v196 = vpop.f32.mrb[0].mxu0
    %v197 = vadd.f32 %v124, %v196
    %v198 = vpop.f32.mrb[0].mxu0
    %199 = vdwg.mxu0
    %v200 = vmax.f32 %v197, 0.0
    %v201 = vld [vmem:[#allocation8] sm:$0xff]
    %v202 = vld [vmem:[#allocation8 + $0x8] sm:$0xff]
    %v203 = vld [vmem:[#allocation8 + $0x10] sm:$0xff]
    %v204 = vld [vmem:[#allocation8 + $0x18] sm:$0xff]
    %v205 = vld [vmem:[#allocation8 + $0x20] sm:$0xff]
    %v206 = vld [vmem:[#allocation8 + $0x28] sm:$0xff]
    %v207 = vld [vmem:[#allocation8 + $0x30] sm:$0xff]
    %v208 = vld [vmem:[#allocation8 + $0x38] sm:$0xff]
    %v209 = vld [vmem:[#allocation8 + $0x40] sm:$0xff]
    %v210 = vld [vmem:[#allocation8 + $0x48] sm:$0xff]
    %v211 = vld [vmem:[#allocation8 + $0x50] sm:$0xff]
    %v212 = vld [vmem:[#allocation8 + $0x58] sm:$0xff]
    %v213 = vld [vmem:[#allocation8 + $0x60] sm:$0xff]
    %v214 = vld [vmem:[#allocation8 + $0x68] sm:$0xff]
    %v215 = vld [vmem:[#allocation8 + $0x70] sm:$0xff]
    %v216 = vld [vmem:[#allocation8 + $0x78] sm:$0xff]
    %v217 = vld [vmem:[#allocation10] sm:$0x1]
    %v219 = vlaneseq
    %v220 = vshrl.u32 %v219, 7
    %v221 = vsub.s32 0, %v220
    %v222 = vrot.slane %v217, %v221
    %224 = vmatprep.subr.mxu0 0.0
    %225 = vmatpush1.msra.mxu0 %v201
    %226 = vmatprep.subr.mxu0 0.0
    %227 = vmatpush1.msra.mxu0 %v202
    %228 = vmatprep.subr.mxu0 0.0
    %229 = vmatpush1.msra.mxu0 %v203
    %230 = vmatprep.subr.mxu0 0.0
    %231 = vmatpush1.msra.mxu0 %v204
    %232 = vmatprep.subr.mxu0 0.0
    %233 = vmatpush1.msra.mxu0 %v205
    %234 = vmatprep.subr.mxu0 0.0
    %235 = vmatpush1.msra.mxu0 %v206
    %236 = vmatprep.subr.mxu0 0.0
    %237 = vmatpush1.msra.mxu0 %v207
    %238 = vmatprep.subr.mxu0 0.0
    %239 = vmatpush1.msra.mxu0 %v208
    %240 = vmatprep.subr.mxu0 0.0
    %241 = vmatpush1.msra.mxu0 %v209
    %242 = vmatprep.subr.mxu0 0.0
    %243 = vmatpush1.msra.mxu0 %v210
    %244 = vmatprep.subr.mxu0 0.0
    %245 = vmatpush1.msra.mxu0 %v211
    %246 = vmatprep.subr.mxu0 0.0
    %247 = vmatpush1.msra.mxu0 %v212
    %248 = vmatprep.subr.mxu0 0.0
    %249 = vmatpush1.msra.mxu0 %v213
    %250 = vmatprep.subr.mxu0 0.0
    %251 = vmatpush1.msra.mxu0 %v214
    %252 = vmatprep.subr.mxu0 0.0
    %253 = vmatpush1.msra.mxu0 %v215
    %254 = vmatprep.subr.mxu0 0.0
    %255 = vmatpush1.msra.mxu0 %v216
    %256 = vmatprep.subr.mxu0 0.0
    %257 = vmatpush1.msra.mxu0 0.0
    %258 = vmatprep.subr.mxu0 0.0
    %259 = vmatpush1.msra.mxu0 0.0
    %260 = vmatprep.subr.mxu0 0.0
    %261 = vmatpush1.msra.mxu0 0.0
    %262 = vmatprep.subr.mxu0 0.0
    %263 = vmatpush1.msra.mxu0 0.0
    %264 = vmatprep.subr.mxu0 0.0
    %265 = vmatpush1.msra.mxu0 0.0
    %266 = vmatprep.subr.mxu0 0.0
    %267 = vmatpush1.msra.mxu0 0.0
    %268 = vmatprep.subr.mxu0 0.0
    %269 = vmatpush1.msra.mxu0 0.0
    %270 = vmatprep.subr.mxu0 0.0
    %271 = vmatpush1.msra.mxu0 0.0
    %272 = vmatprep.subr.mxu0 0.0
    %273 = vmatpush1.msra.mxu0 0.0
    %274 = vmatprep.subr.mxu0 0.0
    %275 = vmatpush1.msra.mxu0 0.0
    %276 = vmatprep.subr.mxu0 0.0
    %277 = vmatpush1.msra.mxu0 0.0
    %278 = vmatprep.subr.mxu0 0.0
    %279 = vmatpush1.msra.mxu0 0.0
    %280 = vmatprep.subr.mxu0 0.0
    %281 = vmatpush1.msra.mxu0 0.0
    %282 = vmatprep.subr.mxu0 0.0
    %283 = vmatpush1.msra.mxu0 0.0
    %284 = vmatprep.subr.mxu0 0.0
    %285 = vmatpush1.msra.mxu0 0.0
    %286 = vmatprep.subr.mxu0 0.0
    %287 = vmatpush1.msra.mxu0 0.0
    %288 = vmatprep.mubr.f32.mxu0 0.0
    %289 = vmatmul.mubr.f32.gmra.mrb[0].mxu0 %v200
    %v290 = vpop.f32.mrb[0].mxu0
    %v291 = vadd.f32 %v222, %v290
    %v292 = vpop.f32.mrb[0].mxu0
    %293 = vdwg.mxu0
    %v294 = vmax.f32 %v291, 0.0
    %v295 = vld [vmem:[#allocation11] sm:$0xff]
    %v296 = vld [vmem:[#allocation11 + $0x8] sm:$0xff]
    %v297 = vld [vmem:[#allocation11 + $0x10] sm:$0xff]
    %v298 = vld [vmem:[#allocation11 + $0x18] sm:$0xff]
    %v299 = vld [vmem:[#allocation11 + $0x20] sm:$0xff]
    %v300 = vld [vmem:[#allocation11 + $0x28] sm:$0xff]
    %v301 = vld [vmem:[#allocation11 + $0x30] sm:$0xff]
    %v302 = vld [vmem:[#allocation11 + $0x38] sm:$0xff]
    %v303 = vld [vmem:[#allocation11 + $0x40] sm:$0xff]
    %v304 = vld [vmem:[#allocation11 + $0x48] sm:$0xff]
    %v305 = vld [vmem:[#allocation11 + $0x50] sm:$0xff]
    %v306 = vld [vmem:[#allocation11 + $0x58] sm:$0xff]
    %v307 = vld [vmem:[#allocation11 + $0x60] sm:$0xff]
    %v308 = vld [vmem:[#allocation11 + $0x68] sm:$0xff]
    %v309 = vld [vmem:[#allocation11 + $0x70] sm:$0xff]
    %v310 = vld [vmem:[#allocation11 + $0x78] sm:$0xff]
    %v311 = vld [vmem:[#allocation13] sm:$0x1]
    %v313 = vlaneseq
    %v314 = vshrl.u32 %v313, 7
    %v315 = vsub.s32 0, %v314
    %v316 = vrot.slane %v311, %v315
    %318 = vmatprep.subr.mxu0 0.0
    %319 = vmatpush1.msra.mxu0 %v295
    %320 = vmatprep.subr.mxu0 0.0
    %321 = vmatpush1.msra.mxu0 %v296
    %322 = vmatprep.subr.mxu0 0.0
    %323 = vmatpush1.msra.mxu0 %v297
    %324 = vmatprep.subr.mxu0 0.0
    %325 = vmatpush1.msra.mxu0 %v298
    %326 = vmatprep.subr.mxu0 0.0
    %327 = vmatpush1.msra.mxu0 %v299
    %328 = vmatprep.subr.mxu0 0.0
    %329 = vmatpush1.msra.mxu0 %v300
    %330 = vmatprep.subr.mxu0 0.0
    %331 = vmatpush1.msra.mxu0 %v301
    %332 = vmatprep.subr.mxu0 0.0
    %333 = vmatpush1.msra.mxu0 %v302
    %334 = vmatprep.subr.mxu0 0.0
    %335 = vmatpush1.msra.mxu0 %v303
    %336 = vmatprep.subr.mxu0 0.0
    %337 = vmatpush1.msra.mxu0 %v304
    %338 = vmatprep.subr.mxu0 0.0
    %339 = vmatpush1.msra.mxu0 %v305
    %340 = vmatprep.subr.mxu0 0.0
    %341 = vmatpush1.msra.mxu0 %v306
    %342 = vmatprep.subr.mxu0 0.0
    %343 = vmatpush1.msra.mxu0 %v307
    %344 = vmatprep.subr.mxu0 0.0
    %345 = vmatpush1.msra.mxu0 %v308
    %346 = vmatprep.subr.mxu0 0.0
    %347 = vmatpush1.msra.mxu0 %v309
    %348 = vmatprep.subr.mxu0 0.0
    %349 = vmatpush1.msra.mxu0 %v310
    %350 = vmatprep.subr.mxu0 0.0
    %351 = vmatpush1.msra.mxu0 0.0
    %352 = vmatprep.subr.mxu0 0.0
    %353 = vmatpush1.msra.mxu0 0.0
    %354 = vmatprep.subr.mxu0 0.0
    %355 = vmatpush1.msra.mxu0 0.0
    %356 = vmatprep.subr.mxu0 0.0
    %357 = vmatpush1.msra.mxu0 0.0
    %358 = vmatprep.subr.mxu0 0.0
    %359 = vmatpush1.msra.mxu0 0.0
    %360 = vmatprep.subr.mxu0 0.0
    %361 = vmatpush1.msra.mxu0 0.0
    %362 = vmatprep.subr.mxu0 0.0
    %363 = vmatpush1.msra.mxu0 0.0
    %364 = vmatprep.subr.mxu0 0.0
    %365 = vmatpush1.msra.mxu0 0.0
    %366 = vmatprep.subr.mxu0 0.0
    %367 = vmatpush1.msra.mxu0 0.0
    %368 = vmatprep.subr.mxu0 0.0
    %369 = vmatpush1.msra.mxu0 0.0
    %370 = vmatprep.subr.mxu0 0.0
    %371 = vmatpush1.msra.mxu0 0.0
    %372 = vmatprep.subr.mxu0 0.0
    %373 = vmatpush1.msra.mxu0 0.0
    %374 = vmatprep.subr.mxu0 0.0
    %375 = vmatpush1.msra.mxu0 0.0
    %376 = vmatprep.subr.mxu0 0.0
    %377 = vmatpush1.msra.mxu0 0.0
    %378 = vmatprep.subr.mxu0 0.0
    %379 = vmatpush1.msra.mxu0 0.0
    %380 = vmatprep.subr.mxu0 0.0
    %381 = vmatpush1.msra.mxu0 0.0
    %382 = vmatprep.mubr.f32.mxu0 0.0
    %383 = vmatmul.mubr.f32.gmra.mrb[0].mxu0 %v294
    %v384 = vpop.f32.mrb[0].mxu0
    %v385 = vadd.f32 %v316, %v384
    %v386 = vpop.f32.mrb[0].mxu0
    %387 = vdwg.mxu0
    %v388 = vmax.f32 %v385, 0.0
    %389 = vst [vmem:[#allocation14] sm:$0xff] %v388
    // Predicated region
    $region58: #{tpu_custom_call.1} parent=1 // pred_check
      _
    $region59: #{tpu_custom_call.1} parent=1 // pred_check_branch
      %391 = sbr.rel (0) target = $region61
    $region60: #{tpu_custom_call.1} parent=1 // pred_region
      %s393 = ssub.s32 128, 128
      %394 = vsyncadd [#allocation4], %s393
      %s396 = sshll.u32 [#allocation14], 4
      %s397 = int_to_ptr.vmem [resolvable:$true] %s396
      %399 = dma.vmem_to_hbm [thread:$0]  %s397, 128, %s7, [#allocation4]
    $region61: #{tpu_custom_call.1} parent=1 // pred_fallthru
      _
    // Predicated region
    $region62: #{tpu_custom_call.1} parent=1 // pred_check
      _
    $region63: #{tpu_custom_call.1} parent=1 // pred_check_branch
      %401 = sbr.rel (0) target = $region65
    $region64: #{tpu_custom_call.1} parent=1 // pred_region
      %402 = dma.done [#allocation4], 128
    $region65: #{tpu_custom_call.1} parent=1 // pred_fallthru
      _
    %403 = vsyncpa [#allocation3], 1
    %404 = vsyncpa [#allocation6], 1
    %405 = vsyncpa [#allocation9], 1
    %406 = vsyncpa [#allocation12], 1
    %407 = vsyncpa [#allocation4], 1

</llo_original>
